<compile_context>
chip_gen: v6e
topology: v6e:2x2x1
jax: 0.10.0
libtpu: 0.0.40
codegen_flags: <defaults>
</compile_context>

<pallas_src>
import jax
import jax.numpy as jnp
from jax import lax
from jax.experimental import pallas as pl
from jax.experimental.pallas import tpu as pltpu

_LANES = 128
_SUBLANES = 8


def _round_up(x: int, m: int) -> int:
    return ((x + m - 1) // m) * m


def _round_down(x: int, m: int) -> int:
    return (x // m) * m


def _tpu_tiling_defaults():
    """Per-generation (max_tile_rows, num_splits)."""
    kind = ""
    try:
        kind = jax.devices()[0].device_kind.lower()
    except Exception:
        pass
    if "v7" in kind or "7x" in kind:
        # 4 MiB f32 per input tile; 2 inputs x 2 buffers = 16 MiB < 32 MiB scoped.
        # TODO(synk): confirm in a v7x trace that the leading "parallel" axis
        # really shards across the two TensorCores; try pltpu.CORE_PARALLEL if not.
        return 8192, 2
    if "v6" in kind:
        return 8192, 1
    # v5e / unknown: 2 MiB per input tile, 8 MiB double-buffered (< 16 MiB scoped).
    return 4096, 1


def _make_sq_diff_kernel(tile_rows: int, tiles_per_split: int,
                         valid_rows: int, needs_mask: bool):
    """Per-split partial sums of (pred - target)^2, accumulated in out_ref."""

    def kernel(pred_ref, tgt_ref, out_ref):
        j = pl.program_id(1)

        # Output block is VMEM-resident across the reduction axis j; zero it
        # at the start of each split's sweep.
        @pl.when(j == 0)
        def _():
            out_ref[...] = jnp.zeros_like(out_ref)

        d = pred_ref[...].astype(jnp.float32) - tgt_ref[...].astype(jnp.float32)
        sq = d * d

        if needs_mask:
            # Only emitted when the grid over-covers the true row count (last
            # tile partial); rows past `valid_rows` hold garbage -> select 0.
            i = pl.program_id(0)
            tile_idx = i * tiles_per_split + j
            row_ids = tile_idx * tile_rows + lax.broadcasted_iota(
                jnp.int32, (tile_rows, _LANES), 0)
            sq = jnp.where(row_ids < valid_rows, sq, 0.0)

        # (tile_rows,128) -> (tile_rows//8, 8, 128) summed over the leading
        # axis: pure VPU adds, vreg-shaped, no XLU / masked stores in the hot
        # loop.  Accumulate directly into the lane-dense output block.
        out_ref[...] += jnp.sum(
            sq.reshape(tile_rows // _SUBLANES, _SUBLANES, _LANES), axis=0)

    return kernel


def _pallas_sq_diff_sum(p2, t2, rows: int, max_tile_rows: int, num_splits: int):
    """sum((p2 - t2)^2) over a (rows, 128) pair of arrays, via Pallas."""
    itemsize = min(jnp.dtype(p2.dtype).itemsize, jnp.dtype(t2.dtype).itemsize)
    row_align = max(_SUBLANES, (_SUBLANES * 4) // itemsize)  # 8 f32 / 16 bf16

    tile_rows = min(max_tile_rows, rows)
    tile_rows = max(row_align, _round_down(tile_rows, row_align))

    total_tiles = pl.cdiv(rows, tile_rows)
    if num_splits < 1 or total_tiles % num_splits != 0:
        num_splits = 1
    tiles_per_split = total_tiles // num_splits
    needs_mask = (num_splits * tiles_per_split * tile_rows != rows)

    kernel = _make_sq_diff_kernel(tile_rows, tiles_per_split, rows, needs_mask)

    def in_map(i, j):
        return (i * tiles_per_split + j, 0)

    in_bytes = rows * _LANES * (jnp.dtype(p2.dtype).itemsize
                                + jnp.dtype(t2.dtype).itemsize)
    out_bytes = num_splits * _SUBLANES * _LANES * 4
    cost = pl.CostEstimate(flops=3 * rows * _LANES, transcendentals=0,
                           bytes_accessed=in_bytes + out_bytes)

    partials = pl.pallas_call(
        kernel,
        out_shape=jax.ShapeDtypeStruct((num_splits * _SUBLANES, _LANES),
                                       jnp.float32),
        grid_spec=pltpu.PrefetchScalarGridSpec(
            num_scalar_prefetch=0,
            grid=(num_splits, tiles_per_split),
            in_specs=[
                pl.BlockSpec((tile_rows, _LANES), in_map),
                pl.BlockSpec((tile_rows, _LANES), in_map),
            ],
            out_specs=pl.BlockSpec((_SUBLANES, _LANES), lambda i, j: (i, 0)),
        ),
        compiler_params=pltpu.CompilerParams(
            # Split axis parallel (sharded across v7x's 2 TCs; harmless on
            # single-core chips); reduction axis stays "arbitrary".
            dimension_semantics=("parallel", "arbitrary"),
        ),
        cost_estimate=cost,
    )(p2, t2)

    # Tiny (num_splits*8*128 f32) reduce; fused with scale/tail in the caller.
    return jnp.sum(partials)


def pallas_weighted_mse(pred, target, weight=1.0, *,
                        max_tile_rows=None, num_splits=None,
                        min_pallas_elems=2048):
    """weight * mean((pred - target)**2); bulk reduction done in Pallas."""
    assert pred.shape == target.shape, (pred.shape, target.shape)
    n = pred.size
    if n == 0:
        return jnp.zeros((), jnp.float32)
    scale = jnp.asarray(weight, dtype=jnp.float32) / n  # weight and 1/N fused

    p_flat = pred.reshape(-1)
    t_flat = target.reshape(-1)

    # Small-input fast path: kernel dispatch overhead would dominate.
    if n < min_pallas_elems:
        d = p_flat.astype(jnp.float32) - t_flat.astype(jnp.float32)
        return jnp.sum(d * d) * scale

    if max_tile_rows is None or num_splits is None:
        auto_rows, auto_splits = _tpu_tiling_defaults()
        if max_tile_rows is None:
            max_tile_rows = auto_rows
        if num_splits is None:
            num_splits = auto_splits

    main_rows = n // _LANES
    main_n = main_rows * _LANES

    # Non-128-aligned inputs: reduce only the tiny (<128 element) tail in XLA;
    # the 128-aligned bulk never gets padded.  Aligned inputs take the
    # zero-copy path (contiguous flat reshape only).
    tail_sum = jnp.zeros((), jnp.float32)
    if main_n != n:
        dt = (p_flat[main_n:].astype(jnp.float32)
              - t_flat[main_n:].astype(jnp.float32))
        tail_sum = jnp.sum(dt * dt)
        p_flat = p_flat[:main_n]
        t_flat = t_flat[:main_n]

    p2 = p_flat.reshape(main_rows, _LANES)
    t2 = t_flat.reshape(main_rows, _LANES)

    main_sum = _pallas_sq_diff_sum(p2, t2, main_rows, max_tile_rows, num_splits)
    return (main_sum + tail_sum) * scale


class LossWrapper:
    """JAX/Pallas port of the PyTorch LossWrapper module."""

    def __init__(self, loss_fn, weight=1):
        if weight <= 0:
            self.loss = None
        else:
            self.loss = loss_fn
        self.weight = weight

    def __call__(self, *args, **kwargs):
        if self.weight > 0:
            # The weight multiply of LossWrapper.forward is folded into the
            # loss fn's (already tiny) scaling epilogue.
            loss = self.loss(*args, weight=self.weight, **kwargs)
            if isinstance(loss, tuple):
                loss_val, *out_values = loss
                return (loss_val, *out_values)
            return loss
        else:
            return 0

    def denorm_loss(self, loss_value):
        if self.weight > 0:
            return loss_value / self.weight
        else:
            return 0


def mse_loss(pred, target, weight=1.0):
    # The wrapped loss; the wrapper's weight is fused into its epilogue.
    return pallas_weighted_mse(pred, target, weight)


if __name__ == "__main__":
    key = jax.random.PRNGKey(0)
    k1, k2, k3, k4, k5, k6 = jax.random.split(key, 6)

    weight = 2.5
    wrapper = LossWrapper(mse_loss, weight=weight)

    # 1) NCHW-like aligned shape (2048 elems = 16 rows of 128) -> Pallas path.
    x_shape = (2, 4, 16, 16)
    pred = jax.random.normal(k1, x_shape, dtype=jnp.float32)
    target = jax.random.normal(k2, x_shape, dtype=jnp.float32)
    out = jax.block_until_ready(wrapper(pred, target))
    ref = weight * jnp.mean((pred - target) ** 2)
    assert jnp.allclose(out, ref, rtol=1e-5, atol=1e-5), (out, ref)

    # 2) Multi-tile accumulation and split ("parallel") axis coverage.
    out_acc = jax.block_until_ready(
        pallas_weighted_mse(pred, target, weight, max_tile_rows=8, num_splits=1))
    assert jnp.allclose(out_acc, ref, rtol=1e-5, atol=1e-5), (out_acc, ref)
    out_split = jax.block_until_ready(
        pallas_weighted_mse(pred, target, weight, max_tile_rows=8, num_splits=2))
    assert jnp.allclose(out_split, ref, rtol=1e-5, atol=1e-5), (out_split, ref)

    # 3) Non-128-aligned shape above the fast-path threshold: kernel on the
    #    aligned bulk (with in-kernel partial-tile mask) + XLA tail.
    y_shape = (3, 5, 17, 19)   # 4845 elements
    pred_o = jax.random.normal(k3, y_shape, dtype=jnp.float32)
    target_o = jax.random.normal(k4, y_shape, dtype=jnp.float32)
    out_o = jax.block_until_ready(wrapper(pred_o, target_o))
    ref_o = weight * jnp.mean((pred_o - target_o) ** 2)
    assert jnp.allclose(out_o, ref_o, rtol=1e-5, atol=1e-5), (out_o, ref_o)

    # 4) Tiny shape -> small-input XLA fast path.
    z_shape = (2, 3, 7, 5)
    pred_s = jax.random.normal(k5, z_shape, dtype=jnp.float32)
    target_s = jax.random.normal(k6, z_shape, dtype=jnp.float32)
    out_s = jax.block_until_ready(wrapper(pred_s, target_s))
    ref_s = weight * jnp.mean((pred_s - target_s) ** 2)
    assert jnp.allclose(out_s, ref_s, rtol=1e-5, atol=1e-5), (out_s, ref_s)

    # 5) bf16 inputs stay bf16 in HBM and are cast to f32 inside the kernel.
    pred_b = pred.astype(jnp.bfloat16)
    target_b = target.astype(jnp.bfloat16)
    out_b = jax.block_until_ready(wrapper(pred_b, target_b))
    ref_b = weight * jnp.mean((pred_b.astype(jnp.float32)
                               - target_b.astype(jnp.float32)) ** 2)
    assert jnp.allclose(out_b, ref_b, rtol=1e-4, atol=1e-4), (out_b, ref_b)

    # denorm_loss path.
    denorm = wrapper.denorm_loss(out)
    assert jnp.allclose(denorm, jnp.mean((pred - target) ** 2),
                        rtol=1e-5, atol=1e-5)

    # weight <= 0 path returns 0 without calling the kernel.
    zero_wrapper = LossWrapper(mse_loss, weight=0)
    assert zero_wrapper(pred, target) == 0
    assert zero_wrapper.denorm_loss(1.0) == 0

    print("KERNEL_OK")
</pallas_src>

<mosaic_0001>
module attributes {stable_mosaic.version = 11 : i64} {
  func.func @kernel(%arg0: i32, %arg1: i32, %arg2: memref<16x128xf32, #tpu.memory_space<vmem>>, %arg3: memref<16x128xf32, #tpu.memory_space<vmem>>, %arg4: memref<8x128xf32, #tpu.memory_space<vmem>>) attributes {dimension_semantics = [#tpu.dimension_semantics<parallel>, #tpu.dimension_semantics<arbitrary>], iteration_bounds = array<i64: 1, 1>, scalar_prefetch = 0 : i64, scratch_operands = 0 : i64, tpu.core_type = #tpu.core_type<tc>, window_params = [{transform_indices = @transform_0, window_bounds = array<i64: 16, 128>}, {transform_indices = @transform_1, window_bounds = array<i64: 16, 128>}, {transform_indices = @transform_2, window_bounds = array<i64: 8, 128>}]} {
    %c0_i32 = arith.constant 0 : i32
    %0 = arith.cmpi eq, %arg1, %c0_i32 : i32
    %1 = arith.extui %0 : i1 to i32
    %c0_i32_0 = arith.constant 0 : i32
    %2 = arith.cmpi ne, %1, %c0_i32_0 : i32
    scf.if %2 {
      %cst_8 = arith.constant 0.000000e+00 : f32
      %12 = vector.broadcast %cst_8 : f32 to vector<8x128xf32>
      %c0_9 = arith.constant 0 : index
      %c0_10 = arith.constant 0 : index
      %13 = vector.load %arg4[%c0_9, %c0_10] : memref<8x128xf32, #tpu.memory_space<vmem>>, vector<8x128xf32>
      tpu.vector_store %arg4[%c0_9, %c0_10], %12 {strides = array<i32>} : memref<8x128xf32, #tpu.memory_space<vmem>>, vector<8x128xf32>,
    } else {
    }
    %c0 = arith.constant 0 : index
    %c0_1 = arith.constant 0 : index
    %3 = vector.load %arg2[%c0, %c0_1] : memref<16x128xf32, #tpu.memory_space<vmem>>, vector<16x128xf32>
    %c0_2 = arith.constant 0 : index
    %c0_3 = arith.constant 0 : index
    %4 = vector.load %arg3[%c0_2, %c0_3] : memref<16x128xf32, #tpu.memory_space<vmem>>, vector<16x128xf32>
    %5 = arith.subf %3, %4 : vector<16x128xf32>
    %6 = arith.mulf %5, %5 : vector<16x128xf32>
    %c0_4 = arith.constant 0 : index
    %c0_5 = arith.constant 0 : index
    %7 = vector.load %arg4[%c0_4, %c0_5] : memref<8x128xf32, #tpu.memory_space<vmem>>, vector<8x128xf32>
    %8 = vector.shape_cast %6 : vector<16x128xf32> to vector<2x8x128xf32>
    %cst = arith.constant dense<0.000000e+00> : vector<8x128xf32>
    %9 = vector.multi_reduction <add>, %8, %cst [0] : vector<2x8x128xf32> to vector<8x128xf32>
    %10 = arith.addf %7, %9 : vector<8x128xf32>
    %c0_6 = arith.constant 0 : index
    %c0_7 = arith.constant 0 : index
    %11 = vector.load %arg4[%c0_6, %c0_7] : memref<8x128xf32, #tpu.memory_space<vmem>>, vector<8x128xf32>
    tpu.vector_store %arg4[%c0_6, %c0_7], %10 {strides = array<i32>} : memref<8x128xf32, #tpu.memory_space<vmem>>, vector<8x128xf32>,
    return
  }
  func.func @transform_0(%arg0: i32, %arg1: i32) -> (i32, i32) {
    %c1_i32 = arith.constant 1 : i32
    %0 = arith.muli %arg0, %c1_i32 : i32
    %1 = arith.addi %0, %arg1 : i32
    %c0_i32 = arith.constant 0 : i32
    %c0_i32_0 = arith.constant 0 : i32
    return %1, %c0_i32 : i32, i32
  }
  func.func @transform_1(%arg0: i32, %arg1: i32) -> (i32, i32) {
    %c1_i32 = arith.constant 1 : i32
    %0 = arith.muli %arg0, %c1_i32 : i32
    %1 = arith.addi %0, %arg1 : i32
    %c0_i32 = arith.constant 0 : i32
    %c0_i32_0 = arith.constant 0 : i32
    return %1, %c0_i32 : i32, i32
  }
  func.func @transform_2(%arg0: i32, %arg1: i32) -> (i32, i32) {
    %c0_i32 = arith.constant 0 : i32
    %c0_i32_0 = arith.constant 0 : i32
    return %arg0, %c0_i32 : i32, i32
  }
}

</mosaic_0001>

<llo_original>
// kernel: tpu_custom_call.1
$region0: #{tpu_custom_call.1}
  #allocation0 [shape = 'u32[]', space=smem, size = 0x4, offset = 0x4, fixed_abs, tag = 'smem constant byte address 0x4 - core index']
  #allocation1 [shape = 'u32[144,128]{1,0:T(1,128)}', space=vmem, size = 0x12000, scoped, tag = 'internal scratch']
  %s0 = inlined_call_operand.hbm [shape: f32[16,128], index: 0, kind: input, shape index: {}]
  %s1 = inlined_call_operand.hbm [shape: f32[16,128], index: 1, kind: input, shape index: {}]
  %s2 = inlined_call_operand.hbm [shape: f32[8,128], index: 2, kind: output, shape index: {}]
  %s3 = sld [smem:[#allocation0]]
  $region30: #{tpu_custom_call.1} parent=0
    _
  %s5 = ssub.s32 1, %s3
  %s6 = scalar_select 0, %s5, %s3
  $region1: #{tpu_custom_call.1} parent=0
    #allocation2 [shape = 'u8[8192]{0}', space=vmem, size = 0x2000, scoped, tag = 'input window, operand 0, single buffered']
    #allocation3 [shape = 's32[1]{0}', space=sflag, size = 0x4, scoped, tag = 'scoped memory for tpu_custom_call.1']
    #allocation4 [shape = 's32[1]{0}', space=sflag, size = 0x4, scoped, tag = 'scoped memory for tpu_custom_call.1']
    #allocation5 [shape = 'u8[8192]{0}', space=vmem, size = 0x2000, scoped, tag = 'input window, operand 1, single buffered']
    #allocation6 [shape = 's32[1]{0}', space=sflag, size = 0x4, scoped, tag = 'scoped memory for tpu_custom_call.1']
    #allocation7 [shape = 'u8[4096]{0}', space=vmem, size = 0x1000, scoped, tag = 'output window, operand 0, single buffered']
    %7 = vsyncpa [#allocation3], 0
    %8 = vsyncpa [#allocation6], 0
    %9 = vsyncpa [#allocation4], 0
    // Predicated region
    $region2: #{tpu_custom_call.1} parent=1 // pred_check
      _
    $region3: #{tpu_custom_call.1} parent=1 // pred_check_branch
      %11 = sbr.rel (0) target = $region5
    $region4: #{tpu_custom_call.1} parent=1 // pred_region
      %s12 = sadd.s32 0, 0
      %s13 = smul.u32 2, %s12
      %s15 = ssub.s32 256, 256
      %16 = vsyncadd [#allocation3], %s15
      %s17 = smul.addr %s13, 128
      %s18 = scalar_lea.hbm %s0, %s17
      %s19 = sshll.u32 [#allocation2], 4
      %s20 = int_to_ptr.vmem [resolvable:$true] %s19
      %25 = dma.hbm_to_vmem [thread:$0]  %s18, 256, %s20, [#allocation3], 128, 128, 8
    $region5: #{tpu_custom_call.1} parent=1 // pred_fallthru
      _
    // Predicated region
    $region6: #{tpu_custom_call.1} parent=1 // pred_check
      _
    $region7: #{tpu_custom_call.1} parent=1 // pred_check_branch
      %27 = sbr.rel (0) target = $region9
    $region8: #{tpu_custom_call.1} parent=1 // pred_region
      %s28 = sadd.s32 0, 0
      %s29 = smul.u32 2, %s28
      %s31 = ssub.s32 256, 256
      %32 = vsyncadd [#allocation6], %s31
      %s33 = smul.addr %s29, 128
      %s34 = scalar_lea.hbm %s1, %s33
      %s35 = sshll.u32 [#allocation5], 4
      %s36 = int_to_ptr.vmem [resolvable:$true] %s35
      %41 = dma.hbm_to_vmem [thread:$0]  %s34, 256, %s36, [#allocation6], 128, 128, 8
    $region9: #{tpu_custom_call.1} parent=1 // pred_fallthru
      _
    // Predicated region
    $region10: #{tpu_custom_call.1} parent=1 // pred_check
      _
    $region11: #{tpu_custom_call.1} parent=1 // pred_check_branch
      %43 = sbr.rel (0) target = $region13
    $region12: #{tpu_custom_call.1} parent=1 // pred_region
      %44 = dma.done [#allocation3], 256
    $region13: #{tpu_custom_call.1} parent=1 // pred_fallthru
      _
    // Predicated region
    $region14: #{tpu_custom_call.1} parent=1 // pred_check
      _
    $region15: #{tpu_custom_call.1} parent=1 // pred_check_branch
      %46 = sbr.rel (0) target = $region17
    $region16: #{tpu_custom_call.1} parent=1 // pred_region
      %47 = dma.done [#allocation6], 256
    $region17: #{tpu_custom_call.1} parent=1 // pred_fallthru
      _
    %s48 = sadd.s32 0, 0
    %s49 = smul.u32 2, %s48
    %s50 = sadd.s32 0, 0
    %s51 = smul.u32 2, %s50
    %p52 = scmp.eq.s32.totalorder 0, 0
    // Predicated region
    $region18: #{tpu_custom_call.1} parent=1 // pred_check
      %p53 = pneg %p52
    $region19: #{tpu_custom_call.1} parent=1 // pred_check_branch
      %55 = sbr.rel (%p53) target = $region21
    $region20: #{tpu_custom_call.1} parent=1 // pred_region
      %56 = vst [vmem:[#allocation7] sm:$0xff] 0.0
    $region21: #{tpu_custom_call.1} parent=1 // pred_fallthru
      _
    %v57 = vld [vmem:[#allocation2] sm:$0xff]
    %v58 = vld [vmem:[#allocation2 + $0x8] sm:$0xff]
    %v59 = vld [vmem:[#allocation5] sm:$0xff]
    %v60 = vld [vmem:[#allocation5 + $0x8] sm:$0xff]
    %v61 = vsub.f32 %v57, %v59
    %v62 = vsub.f32 %v58, %v60
    %v63 = vmul.f32 %v61, %v61
    %v64 = vmul.f32 %v62, %v62
    %v65 = vld [vmem:[#allocation7] sm:$0xff]
    %v66 = vadd.f32 %v63, %v64
    %v67 = vadd.f32 %v65, %v66
    %68 = vst [vmem:[#allocation7] sm:$0xff] %v67
    // Predicated region
    $region22: #{tpu_custom_call.1} parent=1 // pred_check
      _
    $region23: #{tpu_custom_call.1} parent=1 // pred_check_branch
      %70 = sbr.rel (0) target = $region25
    $region24: #{tpu_custom_call.1} parent=1 // pred_region
      %s72 = ssub.s32 128, 128
      %73 = vsyncadd [#allocation4], %s72
      %s75 = sshll.u32 [#allocation7], 4
      %s76 = int_to_ptr.vmem [resolvable:$true] %s75
      %78 = dma.vmem_to_hbm [thread:$0]  %s76, 128, %s2, [#allocation4]
    $region25: #{tpu_custom_call.1} parent=1 // pred_fallthru
      _
    // Predicated region
    $region26: #{tpu_custom_call.1} parent=1 // pred_check
      _
    $region27: #{tpu_custom_call.1} parent=1 // pred_check_branch
      %80 = sbr.rel (0) target = $region29
    $region28: #{tpu_custom_call.1} parent=1 // pred_region
      %81 = dma.done [#allocation4], 128
    $region29: #{tpu_custom_call.1} parent=1 // pred_fallthru
      _
    %82 = vsyncpa [#allocation3], 1
    %83 = vsyncpa [#allocation6], 1
    %84 = vsyncpa [#allocation4], 1

</llo_original>
